<compile_context>
chip_gen: v7x
topology: tpu7x:2x2x1
jax: 0.10.0
libtpu: 0.0.40
codegen_flags: <defaults>
</compile_context>

<pallas_src>
import functools

import jax
import jax.numpy as jnp
import numpy as np
from jax.experimental import pallas as pl
from jax.experimental.pallas import tpu as pltpu


# ---------------------------------------------------------------------------
# Pallas kernel: DMA-level row gather (the token drop itself)
# ---------------------------------------------------------------------------
def _token_drop_kernel(idx_ref, x_hbm, o_ref, copy_sems, *, chunk, k_pad):
    """Gather CHUNK kept token rows of one batch element via HBM->VMEM DMAs.

    idx_ref   : SMEM (B * k_pad,) int32  -- scalar-prefetched, flattened keep indices
    x_hbm     : HBM  (B, N, D)           -- untouched in VMEM; only kept rows are DMA'd
    o_ref     : VMEM (chunk, D)          -- output block for this grid step
    copy_sems : DMA semaphores, one per in-flight row copy
    """
    b = pl.program_id(0)
    c = pl.program_id(1)
    base = b * k_pad + c * chunk

    # Issue all CHUNK row-gather DMAs (HBM -> VMEM output block), then wait.
    # `chunk` is a small compile-time constant (<= 32) -> modest static unroll.
    copies = []
    for j in range(chunk):
        src = idx_ref[base + j]                       # cheap scalar SMEM read
        cp = pltpu.make_async_copy(
            x_hbm.at[b, pl.ds(src, 1), :],            # (1, D) row in HBM
            o_ref.at[pl.ds(j, 1), :],                 # (1, D) row of output block
            copy_sems.at[j],
        )
        cp.start()
        copies.append(cp)
    for cp in copies:
        cp.wait()


def _pick_chunk(k):
    """Rows gathered per grid step. Multiple of 8 (sublane-aligned block) when
    possible, otherwise the whole K (block dim == full array dim is allowed)."""
    if k < 8:
        return k
    return min(32, (k // 8) * 8)


def _token_drop_gather(x, keep_idx):
    """out[b, i, :] = x[b, keep_idx[b, i], :] via a single Pallas kernel."""
    B, N, D = x.shape
    K = keep_idx.shape[1]

    chunk = _pick_chunk(K)
    num_chunks = pl.cdiv(K, chunk)
    k_pad = num_chunks * chunk

    # Safety: indices must be in [0, N). (VMEM/HBM refs have no runtime bounds check.)
    keep_idx = jnp.clip(keep_idx.astype(jnp.int32), 0, N - 1)
    if k_pad != K:
        # Pad with the last kept index; padded rows land in the OOB part of the
        # final output block and are never written back to HBM.
        pad = jnp.broadcast_to(keep_idx[:, -1:], (B, k_pad - K))
        keep_idx = jnp.concatenate([keep_idx, pad], axis=1)
    idx_flat = keep_idx.reshape(-1)                   # 1-D SMEM: no 2-D padding blowup

    kernel = functools.partial(_token_drop_kernel, chunk=chunk, k_pad=k_pad)
    grid_spec = pltpu.PrefetchScalarGridSpec(
        num_scalar_prefetch=1,                        # idx_flat -> SMEM
        grid=(B, num_chunks),
        in_specs=[pl.BlockSpec(memory_space=pl.ANY)], # x stays in HBM; manual DMA gather
        out_specs=pl.BlockSpec((None, chunk, D), lambda b, c, idx: (b, c, 0)),
        scratch_shapes=[pltpu.SemaphoreType.DMA((chunk,))],
    )
    return pl.pallas_call(
        kernel,
        out_shape=jax.ShapeDtypeStruct((B, K, D), x.dtype),
        grid_spec=grid_spec,
        compiler_params=pltpu.CompilerParams(
            # Every (batch, chunk) step is independent -> shard over v7x's 2 TCs.
            dimension_semantics=("parallel", "parallel")),
    )(idx_flat, x)


# ---------------------------------------------------------------------------
# TokenDrop forward (wrapper reproducing the nn.Module behaviour)
# ---------------------------------------------------------------------------
def sample_keep_indices(key, batch, n, p):
    """torch.multinomial(uniform probs, k, replacement=False) has the same
    distribution as taking the first k entries of a uniform random permutation."""
    k = int((1.0 - p) * n)
    keys = jax.random.split(key, batch)
    return jax.vmap(lambda kk: jax.random.permutation(kk, n)[:k])(keys).astype(jnp.int32)


def token_drop(x, p, *, training, key=None):
    """Forward pass of TokenDrop(p) applied to x of shape (b, n, *rest)."""
    assert 0.0 <= p < 1.0, "Drop probability p must be 0 <= p < 1"
    if (not training) or p == 0.0:
        return x                                      # identity fast path (eval mode)
    assert key is not None, "token_drop in training mode with p > 0 requires a PRNG key"

    b, n = x.shape[0], x.shape[1]
    trailing = x.shape[2:]
    d = int(np.prod(trailing)) if trailing else 1
    k = int((1.0 - p) * n)
    if k == 0:                                        # p ~ 1: nothing is kept
        return x[:, :0]

    keep_idx = sample_keep_indices(key, b, n, p)      # (b, k) int32
    out = _token_drop_gather(x.reshape(b, n, d), keep_idx)
    return out.reshape((b, k) + trailing)


# ---------------------------------------------------------------------------
# Demo / self-check
# ---------------------------------------------------------------------------
if __name__ == "__main__":
    root = jax.random.PRNGKey(0)
    k_x, k_drop = jax.random.split(root)

    B, N, D = 2, 16, 128      # (batch, tokens, features); D=128 keeps rows lane-dense
    p = 0.25
    x = jax.random.normal(k_x, (B, N, D), dtype=jnp.float32)

    # Training-mode path -> runs the Pallas DMA-gather kernel.
    out = jax.block_until_ready(token_drop(x, p, training=True, key=k_drop))
    K = int((1.0 - p) * N)
    assert out.shape == (B, K, D), out.shape

    # Reference: identical indices (deterministic given k_drop) + plain JAX gather.
    keep_idx = sample_keep_indices(k_drop, B, N, p)
    ref = jnp.take_along_axis(x, keep_idx[:, :, None], axis=1)
    np.testing.assert_array_equal(np.asarray(out), np.asarray(ref))   # bit-exact copy

    # Eval mode / p == 0 -> identity, exactly as in the PyTorch module.
    np.testing.assert_array_equal(
        np.asarray(token_drop(x, p, training=False)), np.asarray(x))
    np.testing.assert_array_equal(
        np.asarray(token_drop(x, 0.0, training=True, key=k_drop)), np.asarray(x))

    print("KERNEL_OK")
</pallas_src>

<mosaic_0001>
module attributes {stable_mosaic.version = 11 : i64} {
  func.func @_token_drop_kernel(%arg0: i32, %arg1: i32, %arg2: memref<32xi32, #tpu.memory_space<smem>>, %arg3: memref<2x16x128xf32, #tpu.memory_space<any>>, %arg4: memref<1x8x128xf32, #tpu.memory_space<vmem>>, %arg5: memref<8x!tpu.dma_semaphore, #tpu.memory_space<semaphore_mem>>) attributes {dimension_semantics = [#tpu.dimension_semantics<parallel>, #tpu.dimension_semantics<parallel>], iteration_bounds = array<i64: 2, 2>, scalar_prefetch = 1 : i64, scratch_operands = 1 : i64, tpu.core_type = #tpu.core_type<tc>, window_params = [{}, {transform_indices = @transform_1, window_bounds = array<i64: 1, 8, 128>}]} {
    %c16_i32 = arith.constant 16 : i32
    %0 = arith.muli %arg0, %c16_i32 : i32
    %c8_i32 = arith.constant 8 : i32
    %1 = arith.muli %arg1, %c8_i32 : i32
    %2 = arith.addi %0, %1 : i32
    %c0_i32 = arith.constant 0 : i32
    %3 = arith.addi %2, %c0_i32 : i32
    %4 = arith.index_cast %3 : i32 to index
    %5 = memref.load %arg2[%4] : memref<32xi32, #tpu.memory_space<smem>>
    %c0_i32_0 = arith.constant 0 : i32
    %c0_i32_1 = arith.constant 0 : i32
    %6 = tpu.memref_slice %arg3[%arg0, %5, %c0_i32_1] : memref<2x16x128xf32, #tpu.memory_space<any>> -> memref<1x1x128xf32, #tpu.memory_space<any>>
    %7 = tpu.memref_squeeze %6 : memref<1x1x128xf32, #tpu.memory_space<any>> -> memref<1x128xf32, #tpu.memory_space<any>>
    %c0_i32_2 = arith.constant 0 : i32
    %c0_i32_3 = arith.constant 0 : i32
    %c0_i32_4 = arith.constant 0 : i32
    %8 = tpu.memref_slice %arg4[%c0_i32_2, %c0_i32_3, %c0_i32_4] : memref<1x8x128xf32, #tpu.memory_space<vmem>> -> memref<1x1x128xf32, #tpu.memory_space<vmem>>
    %9 = tpu.memref_squeeze %8 : memref<1x1x128xf32, #tpu.memory_space<vmem>> -> memref<1x128xf32, #tpu.memory_space<vmem>>
    %10 = tpu.memref_slice %arg5[%c0_i32_0] : memref<8x!tpu.dma_semaphore, #tpu.memory_space<semaphore_mem>> -> memref<1x!tpu.dma_semaphore, #tpu.memory_space<semaphore_mem>>
    %11 = tpu.memref_squeeze %10 : memref<1x!tpu.dma_semaphore, #tpu.memory_space<semaphore_mem>> -> memref<!tpu.dma_semaphore, #tpu.memory_space<semaphore_mem>>
    tpu.enqueue_dma source(%7 : memref<1x128xf32, #tpu.memory_space<any>>) target(%9 : memref<1x128xf32, #tpu.memory_space<vmem>>) target_semaphore(%11 : memref<!tpu.dma_semaphore, #tpu.memory_space<semaphore_mem>>)
    %c1_i32 = arith.constant 1 : i32
    %12 = arith.addi %2, %c1_i32 : i32
    %13 = arith.index_cast %12 : i32 to index
    %14 = memref.load %arg2[%13] : memref<32xi32, #tpu.memory_space<smem>>
    %c1_i32_5 = arith.constant 1 : i32
    %c0_i32_6 = arith.constant 0 : i32
    %15 = tpu.memref_slice %arg3[%arg0, %14, %c0_i32_6] : memref<2x16x128xf32, #tpu.memory_space<any>> -> memref<1x1x128xf32, #tpu.memory_space<any>>
    %16 = tpu.memref_squeeze %15 : memref<1x1x128xf32, #tpu.memory_space<any>> -> memref<1x128xf32, #tpu.memory_space<any>>
    %c0_i32_7 = arith.constant 0 : i32
    %c1_i32_8 = arith.constant 1 : i32
    %c0_i32_9 = arith.constant 0 : i32
    %17 = tpu.memref_slice %arg4[%c0_i32_7, %c1_i32_8, %c0_i32_9] : memref<1x8x128xf32, #tpu.memory_space<vmem>> -> memref<1x1x128xf32, #tpu.memory_space<vmem>>
    %18 = tpu.memref_squeeze %17 : memref<1x1x128xf32, #tpu.memory_space<vmem>> -> memref<1x128xf32, #tpu.memory_space<vmem>>
    %19 = tpu.memref_slice %arg5[%c1_i32_5] : memref<8x!tpu.dma_semaphore, #tpu.memory_space<semaphore_mem>> -> memref<1x!tpu.dma_semaphore, #tpu.memory_space<semaphore_mem>>
    %20 = tpu.memref_squeeze %19 : memref<1x!tpu.dma_semaphore, #tpu.memory_space<semaphore_mem>> -> memref<!tpu.dma_semaphore, #tpu.memory_space<semaphore_mem>>
    tpu.enqueue_dma source(%16 : memref<1x128xf32, #tpu.memory_space<any>>) target(%18 : memref<1x128xf32, #tpu.memory_space<vmem>>) target_semaphore(%20 : memref<!tpu.dma_semaphore, #tpu.memory_space<semaphore_mem>>)
    %c2_i32 = arith.constant 2 : i32
    %21 = arith.addi %2, %c2_i32 : i32
    %22 = arith.index_cast %21 : i32 to index
    %23 = memref.load %arg2[%22] : memref<32xi32, #tpu.memory_space<smem>>
    %c2_i32_10 = arith.constant 2 : i32
    %c0_i32_11 = arith.constant 0 : i32
    %24 = tpu.memref_slice %arg3[%arg0, %23, %c0_i32_11] : memref<2x16x128xf32, #tpu.memory_space<any>> -> memref<1x1x128xf32, #tpu.memory_space<any>>
    %25 = tpu.memref_squeeze %24 : memref<1x1x128xf32, #tpu.memory_space<any>> -> memref<1x128xf32, #tpu.memory_space<any>>
    %c0_i32_12 = arith.constant 0 : i32
    %c2_i32_13 = arith.constant 2 : i32
    %c0_i32_14 = arith.constant 0 : i32
    %26 = tpu.memref_slice %arg4[%c0_i32_12, %c2_i32_13, %c0_i32_14] : memref<1x8x128xf32, #tpu.memory_space<vmem>> -> memref<1x1x128xf32, #tpu.memory_space<vmem>>
    %27 = tpu.memref_squeeze %26 : memref<1x1x128xf32, #tpu.memory_space<vmem>> -> memref<1x128xf32, #tpu.memory_space<vmem>>
    %28 = tpu.memref_slice %arg5[%c2_i32_10] : memref<8x!tpu.dma_semaphore, #tpu.memory_space<semaphore_mem>> -> memref<1x!tpu.dma_semaphore, #tpu.memory_space<semaphore_mem>>
    %29 = tpu.memref_squeeze %28 : memref<1x!tpu.dma_semaphore, #tpu.memory_space<semaphore_mem>> -> memref<!tpu.dma_semaphore, #tpu.memory_space<semaphore_mem>>
    tpu.enqueue_dma source(%25 : memref<1x128xf32, #tpu.memory_space<any>>) target(%27 : memref<1x128xf32, #tpu.memory_space<vmem>>) target_semaphore(%29 : memref<!tpu.dma_semaphore, #tpu.memory_space<semaphore_mem>>)
    %c3_i32 = arith.constant 3 : i32
    %30 = arith.addi %2, %c3_i32 : i32
    %31 = arith.index_cast %30 : i32 to index
    %32 = memref.load %arg2[%31] : memref<32xi32, #tpu.memory_space<smem>>
    %c3_i32_15 = arith.constant 3 : i32
    %c0_i32_16 = arith.constant 0 : i32
    %33 = tpu.memref_slice %arg3[%arg0, %32, %c0_i32_16] : memref<2x16x128xf32, #tpu.memory_space<any>> -> memref<1x1x128xf32, #tpu.memory_space<any>>
    %34 = tpu.memref_squeeze %33 : memref<1x1x128xf32, #tpu.memory_space<any>> -> memref<1x128xf32, #tpu.memory_space<any>>
    %c0_i32_17 = arith.constant 0 : i32
    %c3_i32_18 = arith.constant 3 : i32
    %c0_i32_19 = arith.constant 0 : i32
    %35 = tpu.memref_slice %arg4[%c0_i32_17, %c3_i32_18, %c0_i32_19] : memref<1x8x128xf32, #tpu.memory_space<vmem>> -> memref<1x1x128xf32, #tpu.memory_space<vmem>>
    %36 = tpu.memref_squeeze %35 : memref<1x1x128xf32, #tpu.memory_space<vmem>> -> memref<1x128xf32, #tpu.memory_space<vmem>>
    %37 = tpu.memref_slice %arg5[%c3_i32_15] : memref<8x!tpu.dma_semaphore, #tpu.memory_space<semaphore_mem>> -> memref<1x!tpu.dma_semaphore, #tpu.memory_space<semaphore_mem>>
    %38 = tpu.memref_squeeze %37 : memref<1x!tpu.dma_semaphore, #tpu.memory_space<semaphore_mem>> -> memref<!tpu.dma_semaphore, #tpu.memory_space<semaphore_mem>>
    tpu.enqueue_dma source(%34 : memref<1x128xf32, #tpu.memory_space<any>>) target(%36 : memref<1x128xf32, #tpu.memory_space<vmem>>) target_semaphore(%38 : memref<!tpu.dma_semaphore, #tpu.memory_space<semaphore_mem>>)
    %c4_i32 = arith.constant 4 : i32
    %39 = arith.addi %2, %c4_i32 : i32
    %40 = arith.index_cast %39 : i32 to index
    %41 = memref.load %arg2[%40] : memref<32xi32, #tpu.memory_space<smem>>
    %c4_i32_20 = arith.constant 4 : i32
    %c0_i32_21 = arith.constant 0 : i32
    %42 = tpu.memref_slice %arg3[%arg0, %41, %c0_i32_21] : memref<2x16x128xf32, #tpu.memory_space<any>> -> memref<1x1x128xf32, #tpu.memory_space<any>>
    %43 = tpu.memref_squeeze %42 : memref<1x1x128xf32, #tpu.memory_space<any>> -> memref<1x128xf32, #tpu.memory_space<any>>
    %c0_i32_22 = arith.constant 0 : i32
    %c4_i32_23 = arith.constant 4 : i32
    %c0_i32_24 = arith.constant 0 : i32
    %44 = tpu.memref_slice %arg4[%c0_i32_22, %c4_i32_23, %c0_i32_24] : memref<1x8x128xf32, #tpu.memory_space<vmem>> -> memref<1x1x128xf32, #tpu.memory_space<vmem>>
    %45 = tpu.memref_squeeze %44 : memref<1x1x128xf32, #tpu.memory_space<vmem>> -> memref<1x128xf32, #tpu.memory_space<vmem>>
    %46 = tpu.memref_slice %arg5[%c4_i32_20] : memref<8x!tpu.dma_semaphore, #tpu.memory_space<semaphore_mem>> -> memref<1x!tpu.dma_semaphore, #tpu.memory_space<semaphore_mem>>
    %47 = tpu.memref_squeeze %46 : memref<1x!tpu.dma_semaphore, #tpu.memory_space<semaphore_mem>> -> memref<!tpu.dma_semaphore, #tpu.memory_space<semaphore_mem>>
    tpu.enqueue_dma source(%43 : memref<1x128xf32, #tpu.memory_space<any>>) target(%45 : memref<1x128xf32, #tpu.memory_space<vmem>>) target_semaphore(%47 : memref<!tpu.dma_semaphore, #tpu.memory_space<semaphore_mem>>)
    %c5_i32 = arith.constant 5 : i32
    %48 = arith.addi %2, %c5_i32 : i32
    %49 = arith.index_cast %48 : i32 to index
    %50 = memref.load %arg2[%49] : memref<32xi32, #tpu.memory_space<smem>>
    %c5_i32_25 = arith.constant 5 : i32
    %c0_i32_26 = arith.constant 0 : i32
    %51 = tpu.memref_slice %arg3[%arg0, %50, %c0_i32_26] : memref<2x16x128xf32, #tpu.memory_space<any>> -> memref<1x1x128xf32, #tpu.memory_space<any>>
    %52 = tpu.memref_squeeze %51 : memref<1x1x128xf32, #tpu.memory_space<any>> -> memref<1x128xf32, #tpu.memory_space<any>>
    %c0_i32_27 = arith.constant 0 : i32
    %c5_i32_28 = arith.constant 5 : i32
    %c0_i32_29 = arith.constant 0 : i32
    %53 = tpu.memref_slice %arg4[%c0_i32_27, %c5_i32_28, %c0_i32_29] : memref<1x8x128xf32, #tpu.memory_space<vmem>> -> memref<1x1x128xf32, #tpu.memory_space<vmem>>
    %54 = tpu.memref_squeeze %53 : memref<1x1x128xf32, #tpu.memory_space<vmem>> -> memref<1x128xf32, #tpu.memory_space<vmem>>
    %55 = tpu.memref_slice %arg5[%c5_i32_25] : memref<8x!tpu.dma_semaphore, #tpu.memory_space<semaphore_mem>> -> memref<1x!tpu.dma_semaphore, #tpu.memory_space<semaphore_mem>>
    %56 = tpu.memref_squeeze %55 : memref<1x!tpu.dma_semaphore, #tpu.memory_space<semaphore_mem>> -> memref<!tpu.dma_semaphore, #tpu.memory_space<semaphore_mem>>
    tpu.enqueue_dma source(%52 : memref<1x128xf32, #tpu.memory_space<any>>) target(%54 : memref<1x128xf32, #tpu.memory_space<vmem>>) target_semaphore(%56 : memref<!tpu.dma_semaphore, #tpu.memory_space<semaphore_mem>>)
    %c6_i32 = arith.constant 6 : i32
    %57 = arith.addi %2, %c6_i32 : i32
    %58 = arith.index_cast %57 : i32 to index
    %59 = memref.load %arg2[%58] : memref<32xi32, #tpu.memory_space<smem>>
    %c6_i32_30 = arith.constant 6 : i32
    %c0_i32_31 = arith.constant 0 : i32
    %60 = tpu.memref_slice %arg3[%arg0, %59, %c0_i32_31] : memref<2x16x128xf32, #tpu.memory_space<any>> -> memref<1x1x128xf32, #tpu.memory_space<any>>
    %61 = tpu.memref_squeeze %60 : memref<1x1x128xf32, #tpu.memory_space<any>> -> memref<1x128xf32, #tpu.memory_space<any>>
    %c0_i32_32 = arith.constant 0 : i32
    %c6_i32_33 = arith.constant 6 : i32
    %c0_i32_34 = arith.constant 0 : i32
    %62 = tpu.memref_slice %arg4[%c0_i32_32, %c6_i32_33, %c0_i32_34] : memref<1x8x128xf32, #tpu.memory_space<vmem>> -> memref<1x1x128xf32, #tpu.memory_space<vmem>>
    %63 = tpu.memref_squeeze %62 : memref<1x1x128xf32, #tpu.memory_space<vmem>> -> memref<1x128xf32, #tpu.memory_space<vmem>>
    %64 = tpu.memref_slice %arg5[%c6_i32_30] : memref<8x!tpu.dma_semaphore, #tpu.memory_space<semaphore_mem>> -> memref<1x!tpu.dma_semaphore, #tpu.memory_space<semaphore_mem>>
    %65 = tpu.memref_squeeze %64 : memref<1x!tpu.dma_semaphore, #tpu.memory_space<semaphore_mem>> -> memref<!tpu.dma_semaphore, #tpu.memory_space<semaphore_mem>>
    tpu.enqueue_dma source(%61 : memref<1x128xf32, #tpu.memory_space<any>>) target(%63 : memref<1x128xf32, #tpu.memory_space<vmem>>) target_semaphore(%65 : memref<!tpu.dma_semaphore, #tpu.memory_space<semaphore_mem>>)
    %c7_i32 = arith.constant 7 : i32
    %66 = arith.addi %2, %c7_i32 : i32
    %67 = arith.index_cast %66 : i32 to index
    %68 = memref.load %arg2[%67] : memref<32xi32, #tpu.memory_space<smem>>
    %c7_i32_35 = arith.constant 7 : i32
    %c0_i32_36 = arith.constant 0 : i32
    %69 = tpu.memref_slice %arg3[%arg0, %68, %c0_i32_36] : memref<2x16x128xf32, #tpu.memory_space<any>> -> memref<1x1x128xf32, #tpu.memory_space<any>>
    %70 = tpu.memref_squeeze %69 : memref<1x1x128xf32, #tpu.memory_space<any>> -> memref<1x128xf32, #tpu.memory_space<any>>
    %c0_i32_37 = arith.constant 0 : i32
    %c7_i32_38 = arith.constant 7 : i32
    %c0_i32_39 = arith.constant 0 : i32
    %71 = tpu.memref_slice %arg4[%c0_i32_37, %c7_i32_38, %c0_i32_39] : memref<1x8x128xf32, #tpu.memory_space<vmem>> -> memref<1x1x128xf32, #tpu.memory_space<vmem>>
    %72 = tpu.memref_squeeze %71 : memref<1x1x128xf32, #tpu.memory_space<vmem>> -> memref<1x128xf32, #tpu.memory_space<vmem>>
    %73 = tpu.memref_slice %arg5[%c7_i32_35] : memref<8x!tpu.dma_semaphore, #tpu.memory_space<semaphore_mem>> -> memref<1x!tpu.dma_semaphore, #tpu.memory_space<semaphore_mem>>
    %74 = tpu.memref_squeeze %73 : memref<1x!tpu.dma_semaphore, #tpu.memory_space<semaphore_mem>> -> memref<!tpu.dma_semaphore, #tpu.memory_space<semaphore_mem>>
    tpu.enqueue_dma source(%70 : memref<1x128xf32, #tpu.memory_space<any>>) target(%72 : memref<1x128xf32, #tpu.memory_space<vmem>>) target_semaphore(%74 : memref<!tpu.dma_semaphore, #tpu.memory_space<semaphore_mem>>)
    %c0_i32_40 = arith.constant 0 : i32
    %c0_i32_41 = arith.constant 0 : i32
    %75 = tpu.memref_slice %arg3[%arg0, %5, %c0_i32_41] : memref<2x16x128xf32, #tpu.memory_space<any>> -> memref<1x1x128xf32, #tpu.memory_space<any>>
    %76 = tpu.memref_squeeze %75 : memref<1x1x128xf32, #tpu.memory_space<any>> -> memref<1x128xf32, #tpu.memory_space<any>>
    %c0_i32_42 = arith.constant 0 : i32
    %c0_i32_43 = arith.constant 0 : i32
    %c0_i32_44 = arith.constant 0 : i32
    %77 = tpu.memref_slice %arg4[%c0_i32_42, %c0_i32_43, %c0_i32_44] : memref<1x8x128xf32, #tpu.memory_space<vmem>> -> memref<1x1x128xf32, #tpu.memory_space<vmem>>
    %78 = tpu.memref_squeeze %77 : memref<1x1x128xf32, #tpu.memory_space<vmem>> -> memref<1x128xf32, #tpu.memory_space<vmem>>
    %79 = tpu.memref_slice %arg5[%c0_i32_40] : memref<8x!tpu.dma_semaphore, #tpu.memory_space<semaphore_mem>> -> memref<1x!tpu.dma_semaphore, #tpu.memory_space<semaphore_mem>>
    %80 = tpu.memref_squeeze %79 : memref<1x!tpu.dma_semaphore, #tpu.memory_space<semaphore_mem>> -> memref<!tpu.dma_semaphore, #tpu.memory_space<semaphore_mem>>
    tpu.wait_dma2 semaphore(%80 : memref<!tpu.dma_semaphore, #tpu.memory_space<semaphore_mem>>) src(%76 : memref<1x128xf32, #tpu.memory_space<any>>) dst(%78 : memref<1x128xf32, #tpu.memory_space<vmem>>)
    %c1_i32_45 = arith.constant 1 : i32
    %c0_i32_46 = arith.constant 0 : i32
    %81 = tpu.memref_slice %arg3[%arg0, %14, %c0_i32_46] : memref<2x16x128xf32, #tpu.memory_space<any>> -> memref<1x1x128xf32, #tpu.memory_space<any>>
    %82 = tpu.memref_squeeze %81 : memref<1x1x128xf32, #tpu.memory_space<any>> -> memref<1x128xf32, #tpu.memory_space<any>>
    %c0_i32_47 = arith.constant 0 : i32
    %c1_i32_48 = arith.constant 1 : i32
    %c0_i32_49 = arith.constant 0 : i32
    %83 = tpu.memref_slice %arg4[%c0_i32_47, %c1_i32_48, %c0_i32_49] : memref<1x8x128xf32, #tpu.memory_space<vmem>> -> memref<1x1x128xf32, #tpu.memory_space<vmem>>
    %84 = tpu.memref_squeeze %83 : memref<1x1x128xf32, #tpu.memory_space<vmem>> -> memref<1x128xf32, #tpu.memory_space<vmem>>
    %85 = tpu.memref_slice %arg5[%c1_i32_45] : memref<8x!tpu.dma_semaphore, #tpu.memory_space<semaphore_mem>> -> memref<1x!tpu.dma_semaphore, #tpu.memory_space<semaphore_mem>>
    %86 = tpu.memref_squeeze %85 : memref<1x!tpu.dma_semaphore, #tpu.memory_space<semaphore_mem>> -> memref<!tpu.dma_semaphore, #tpu.memory_space<semaphore_mem>>
    tpu.wait_dma2 semaphore(%86 : memref<!tpu.dma_semaphore, #tpu.memory_space<semaphore_mem>>) src(%82 : memref<1x128xf32, #tpu.memory_space<any>>) dst(%84 : memref<1x128xf32, #tpu.memory_space<vmem>>)
    %c2_i32_50 = arith.constant 2 : i32
    %c0_i32_51 = arith.constant 0 : i32
    %87 = tpu.memref_slice %arg3[%arg0, %23, %c0_i32_51] : memref<2x16x128xf32, #tpu.memory_space<any>> -> memref<1x1x128xf32, #tpu.memory_space<any>>
    %88 = tpu.memref_squeeze %87 : memref<1x1x128xf32, #tpu.memory_space<any>> -> memref<1x128xf32, #tpu.memory_space<any>>
    %c0_i32_52 = arith.constant 0 : i32
    %c2_i32_53 = arith.constant 2 : i32
    %c0_i32_54 = arith.constant 0 : i32
    %89 = tpu.memref_slice %arg4[%c0_i32_52, %c2_i32_53, %c0_i32_54] : memref<1x8x128xf32, #tpu.memory_space<vmem>> -> memref<1x1x128xf32, #tpu.memory_space<vmem>>
    %90 = tpu.memref_squeeze %89 : memref<1x1x128xf32, #tpu.memory_space<vmem>> -> memref<1x128xf32, #tpu.memory_space<vmem>>
    %91 = tpu.memref_slice %arg5[%c2_i32_50] : memref<8x!tpu.dma_semaphore, #tpu.memory_space<semaphore_mem>> -> memref<1x!tpu.dma_semaphore, #tpu.memory_space<semaphore_mem>>
    %92 = tpu.memref_squeeze %91 : memref<1x!tpu.dma_semaphore, #tpu.memory_space<semaphore_mem>> -> memref<!tpu.dma_semaphore, #tpu.memory_space<semaphore_mem>>
    tpu.wait_dma2 semaphore(%92 : memref<!tpu.dma_semaphore, #tpu.memory_space<semaphore_mem>>) src(%88 : memref<1x128xf32, #tpu.memory_space<any>>) dst(%90 : memref<1x128xf32, #tpu.memory_space<vmem>>)
    %c3_i32_55 = arith.constant 3 : i32
    %c0_i32_56 = arith.constant 0 : i32
    %93 = tpu.memref_slice %arg3[%arg0, %32, %c0_i32_56] : memref<2x16x128xf32, #tpu.memory_space<any>> -> memref<1x1x128xf32, #tpu.memory_space<any>>
    %94 = tpu.memref_squeeze %93 : memref<1x1x128xf32, #tpu.memory_space<any>> -> memref<1x128xf32, #tpu.memory_space<any>>
    %c0_i32_57 = arith.constant 0 : i32
    %c3_i32_58 = arith.constant 3 : i32
    %c0_i32_59 = arith.constant 0 : i32
    %95 = tpu.memref_slice %arg4[%c0_i32_57, %c3_i32_58, %c0_i32_59] : memref<1x8x128xf32, #tpu.memory_space<vmem>> -> memref<1x1x128xf32, #tpu.memory_space<vmem>>
    %96 = tpu.memref_squeeze %95 : memref<1x1x128xf32, #tpu.memory_space<vmem>> -> memref<1x128xf32, #tpu.memory_space<vmem>>
    %97 = tpu.memref_slice %arg5[%c3_i32_55] : memref<8x!tpu.dma_semaphore, #tpu.memory_space<semaphore_mem>> -> memref<1x!tpu.dma_semaphore, #tpu.memory_space<semaphore_mem>>
    %98 = tpu.memref_squeeze %97 : memref<1x!tpu.dma_semaphore, #tpu.memory_space<semaphore_mem>> -> memref<!tpu.dma_semaphore, #tpu.memory_space<semaphore_mem>>
    tpu.wait_dma2 semaphore(%98 : memref<!tpu.dma_semaphore, #tpu.memory_space<semaphore_mem>>) src(%94 : memref<1x128xf32, #tpu.memory_space<any>>) dst(%96 : memref<1x128xf32, #tpu.memory_space<vmem>>)
    %c4_i32_60 = arith.constant 4 : i32
    %c0_i32_61 = arith.constant 0 : i32
    %99 = tpu.memref_slice %arg3[%arg0, %41, %c0_i32_61] : memref<2x16x128xf32, #tpu.memory_space<any>> -> memref<1x1x128xf32, #tpu.memory_space<any>>
    %100 = tpu.memref_squeeze %99 : memref<1x1x128xf32, #tpu.memory_space<any>> -> memref<1x128xf32, #tpu.memory_space<any>>
    %c0_i32_62 = arith.constant 0 : i32
    %c4_i32_63 = arith.constant 4 : i32
    %c0_i32_64 = arith.constant 0 : i32
    %101 = tpu.memref_slice %arg4[%c0_i32_62, %c4_i32_63, %c0_i32_64] : memref<1x8x128xf32, #tpu.memory_space<vmem>> -> memref<1x1x128xf32, #tpu.memory_space<vmem>>
    %102 = tpu.memref_squeeze %101 : memref<1x1x128xf32, #tpu.memory_space<vmem>> -> memref<1x128xf32, #tpu.memory_space<vmem>>
    %103 = tpu.memref_slice %arg5[%c4_i32_60] : memref<8x!tpu.dma_semaphore, #tpu.memory_space<semaphore_mem>> -> memref<1x!tpu.dma_semaphore, #tpu.memory_space<semaphore_mem>>
    %104 = tpu.memref_squeeze %103 : memref<1x!tpu.dma_semaphore, #tpu.memory_space<semaphore_mem>> -> memref<!tpu.dma_semaphore, #tpu.memory_space<semaphore_mem>>
    tpu.wait_dma2 semaphore(%104 : memref<!tpu.dma_semaphore, #tpu.memory_space<semaphore_mem>>) src(%100 : memref<1x128xf32, #tpu.memory_space<any>>) dst(%102 : memref<1x128xf32, #tpu.memory_space<vmem>>)
    %c5_i32_65 = arith.constant 5 : i32
    %c0_i32_66 = arith.constant 0 : i32
    %105 = tpu.memref_slice %arg3[%arg0, %50, %c0_i32_66] : memref<2x16x128xf32, #tpu.memory_space<any>> -> memref<1x1x128xf32, #tpu.memory_space<any>>
    %106 = tpu.memref_squeeze %105 : memref<1x1x128xf32, #tpu.memory_space<any>> -> memref<1x128xf32, #tpu.memory_space<any>>
    %c0_i32_67 = arith.constant 0 : i32
    %c5_i32_68 = arith.constant 5 : i32
    %c0_i32_69 = arith.constant 0 : i32
    %107 = tpu.memref_slice %arg4[%c0_i32_67, %c5_i32_68, %c0_i32_69] : memref<1x8x128xf32, #tpu.memory_space<vmem>> -> memref<1x1x128xf32, #tpu.memory_space<vmem>>
    %108 = tpu.memref_squeeze %107 : memref<1x1x128xf32, #tpu.memory_space<vmem>> -> memref<1x128xf32, #tpu.memory_space<vmem>>
    %109 = tpu.memref_slice %arg5[%c5_i32_65] : memref<8x!tpu.dma_semaphore, #tpu.memory_space<semaphore_mem>> -> memref<1x!tpu.dma_semaphore, #tpu.memory_space<semaphore_mem>>
    %110 = tpu.memref_squeeze %109 : memref<1x!tpu.dma_semaphore, #tpu.memory_space<semaphore_mem>> -> memref<!tpu.dma_semaphore, #tpu.memory_space<semaphore_mem>>
    tpu.wait_dma2 semaphore(%110 : memref<!tpu.dma_semaphore, #tpu.memory_space<semaphore_mem>>) src(%106 : memref<1x128xf32, #tpu.memory_space<any>>) dst(%108 : memref<1x128xf32, #tpu.memory_space<vmem>>)
    %c6_i32_70 = arith.constant 6 : i32
    %c0_i32_71 = arith.constant 0 : i32
    %111 = tpu.memref_slice %arg3[%arg0, %59, %c0_i32_71] : memref<2x16x128xf32, #tpu.memory_space<any>> -> memref<1x1x128xf32, #tpu.memory_space<any>>
    %112 = tpu.memref_squeeze %111 : memref<1x1x128xf32, #tpu.memory_space<any>> -> memref<1x128xf32, #tpu.memory_space<any>>
    %c0_i32_72 = arith.constant 0 : i32
    %c6_i32_73 = arith.constant 6 : i32
    %c0_i32_74 = arith.constant 0 : i32
    %113 = tpu.memref_slice %arg4[%c0_i32_72, %c6_i32_73, %c0_i32_74] : memref<1x8x128xf32, #tpu.memory_space<vmem>> -> memref<1x1x128xf32, #tpu.memory_space<vmem>>
    %114 = tpu.memref_squeeze %113 : memref<1x1x128xf32, #tpu.memory_space<vmem>> -> memref<1x128xf32, #tpu.memory_space<vmem>>
    %115 = tpu.memref_slice %arg5[%c6_i32_70] : memref<8x!tpu.dma_semaphore, #tpu.memory_space<semaphore_mem>> -> memref<1x!tpu.dma_semaphore, #tpu.memory_space<semaphore_mem>>
    %116 = tpu.memref_squeeze %115 : memref<1x!tpu.dma_semaphore, #tpu.memory_space<semaphore_mem>> -> memref<!tpu.dma_semaphore, #tpu.memory_space<semaphore_mem>>
    tpu.wait_dma2 semaphore(%116 : memref<!tpu.dma_semaphore, #tpu.memory_space<semaphore_mem>>) src(%112 : memref<1x128xf32, #tpu.memory_space<any>>) dst(%114 : memref<1x128xf32, #tpu.memory_space<vmem>>)
    %c7_i32_75 = arith.constant 7 : i32
    %c0_i32_76 = arith.constant 0 : i32
    %117 = tpu.memref_slice %arg3[%arg0, %68, %c0_i32_76] : memref<2x16x128xf32, #tpu.memory_space<any>> -> memref<1x1x128xf32, #tpu.memory_space<any>>
    %118 = tpu.memref_squeeze %117 : memref<1x1x128xf32, #tpu.memory_space<any>> -> memref<1x128xf32, #tpu.memory_space<any>>
    %c0_i32_77 = arith.constant 0 : i32
    %c7_i32_78 = arith.constant 7 : i32
    %c0_i32_79 = arith.constant 0 : i32
    %119 = tpu.memref_slice %arg4[%c0_i32_77, %c7_i32_78, %c0_i32_79] : memref<1x8x128xf32, #tpu.memory_space<vmem>> -> memref<1x1x128xf32, #tpu.memory_space<vmem>>
    %120 = tpu.memref_squeeze %119 : memref<1x1x128xf32, #tpu.memory_space<vmem>> -> memref<1x128xf32, #tpu.memory_space<vmem>>
    %121 = tpu.memref_slice %arg5[%c7_i32_75] : memref<8x!tpu.dma_semaphore, #tpu.memory_space<semaphore_mem>> -> memref<1x!tpu.dma_semaphore, #tpu.memory_space<semaphore_mem>>
    %122 = tpu.memref_squeeze %121 : memref<1x!tpu.dma_semaphore, #tpu.memory_space<semaphore_mem>> -> memref<!tpu.dma_semaphore, #tpu.memory_space<semaphore_mem>>
    tpu.wait_dma2 semaphore(%122 : memref<!tpu.dma_semaphore, #tpu.memory_space<semaphore_mem>>) src(%118 : memref<1x128xf32, #tpu.memory_space<any>>) dst(%120 : memref<1x128xf32, #tpu.memory_space<vmem>>)
    return
  }
  func.func @transform_1(%arg0: i32, %arg1: i32, %arg2: memref<32xi32, #tpu.memory_space<smem>>) -> (i32, i32, i32) {
    %c0_i32 = arith.constant 0 : i32
    %c0_i32_0 = arith.constant 0 : i32
    return %arg0, %arg1, %c0_i32 : i32, i32, i32
  }
}

</mosaic_0001>

<llo_original>
// kernel: tpu_custom_call.1
$region0: #{tpu_custom_call.1}
  #allocation0 [shape = 'u32[]', space=smem, size = 0x4, offset = 0x4, fixed_abs, tag = 'smem constant byte address 0x4 - core index']
  #allocation1 [shape = 'u32[144,128]{1,0:T(1,128)}', space=vmem, size = 0x12000, scoped, tag = 'internal scratch']
  #allocation2 [shape = 's32[8]{0}', space=sflag, size = 0x20, scoped, tag = 'scratch operand']
  #allocation3 [shape = 's32[1]{0}', space=sflag, size = 0x4, scoped, tag = 'scoped memory for tpu_custom_call.1']
  #allocation4 [shape = 'u8[512]{0}', space=smem, size = 0x200, scoped, tag = 'prefetched SMEM operand 0']
  #allocation5 [shape = 's32[]', space=sflag, size = 0x4, offset = 0, fixed_abs, tag = 'sflag constant byte address 0x0 - dummy sync flag']
  #allocation6 [shape = 's32[]', space=sflag, size = 0x4, offset = 0, fixed_abs, tag = 'sflag constant byte address 0x0 - dummy sync flag']
  #allocation7 [shape = 'u32[]', space=smem, size = 0x4, offset = 0x44, fixed_abs, tag = 'smem constant byte address 0x44 - assertion arg 0']
  #allocation8 [shape = 'u32[]', space=smem, size = 0x4, offset = 0x48, fixed_abs, tag = 'smem constant byte address 0x48 - assertion arg 1']
  #allocation9 [shape = 's32[]', space=sflag, size = 0x4, offset = 0, fixed_abs, tag = 'sflag constant byte address 0x0 - dummy sync flag']
  #allocation10 [shape = 's32[]', space=sflag, size = 0x4, offset = 0, fixed_abs, tag = 'sflag constant byte address 0x0 - dummy sync flag']
  #allocation11 [shape = 's32[]', space=sflag, size = 0x4, offset = 0, fixed_abs, tag = 'sflag constant byte address 0x0 - dummy sync flag']
  #allocation12 [shape = 's32[]', space=sflag, size = 0x4, offset = 0, fixed_abs, tag = 'sflag constant byte address 0x0 - dummy sync flag']
  #allocation13 [shape = 's32[]', space=sflag, size = 0x4, offset = 0, fixed_abs, tag = 'sflag constant byte address 0x0 - dummy sync flag']
  #allocation14 [shape = 's32[]', space=sflag, size = 0x4, offset = 0, fixed_abs, tag = 'sflag constant byte address 0x0 - dummy sync flag']
  #allocation15 [shape = 's32[]', space=sflag, size = 0x4, offset = 0, fixed_abs, tag = 'sflag constant byte address 0x0 - dummy sync flag']
  #allocation16 [shape = 's32[]', space=sflag, size = 0x4, offset = 0, fixed_abs, tag = 'sflag constant byte address 0x0 - dummy sync flag']
  #allocation17 [shape = 's32[]', space=sflag, size = 0x4, offset = 0, fixed_abs, tag = 'sflag constant byte address 0x0 - dummy sync flag']
  #allocation18 [shape = 's32[]', space=sflag, size = 0x4, offset = 0, fixed_abs, tag = 'sflag constant byte address 0x0 - dummy sync flag']
  #allocation19 [shape = 's32[]', space=sflag, size = 0x4, offset = 0, fixed_abs, tag = 'sflag constant byte address 0x0 - dummy sync flag']
  #allocation20 [shape = 's32[]', space=sflag, size = 0x4, offset = 0, fixed_abs, tag = 'sflag constant byte address 0x0 - dummy sync flag']
  #allocation21 [shape = 's32[]', space=sflag, size = 0x4, offset = 0, fixed_abs, tag = 'sflag constant byte address 0x0 - dummy sync flag']
  #allocation22 [shape = 's32[]', space=sflag, size = 0x4, offset = 0, fixed_abs, tag = 'sflag constant byte address 0x0 - dummy sync flag']
  %s0 = inlined_call_operand.hbm [shape: s32[32], index: 0, kind: input, shape index: {}]
  %s1 = inlined_call_operand.hbm [shape: f32[2,16,128], index: 1, kind: input, shape index: {}]
  %s2 = inlined_call_operand.vmem [shape: f32[2,12,128], index: 2, kind: output, shape index: {}]
  %s3 = sld [smem:[#allocation0]]
  $region57: #{tpu_custom_call.1} parent=0
    _
  %s5 = ssub.s32 1, %s3
  %s6 = scalar_select 0, %s5, %s3
  %8 = dma.hbm_to_smem %s0, 16, [#allocation4], [#allocation3]
  %9 = dma.done [#allocation3], 16
  %10 = sfence
  loop: start=0, step=1, limit=5
  $region2: #{tpu_custom_call.1} parent=0 // loop_pre_header
    _
  $region3: #{tpu_custom_call.1} parent=0 // loop_header
    %s12 = sphi 0, %s16
    %p13 = scmp.ge.s32.totalorder %s12, 5
    %s18 = sphi 0, %s28
    %s19 = sphi 0, %s24
    %s20 = sphi 0, %s18
    %s21 = sphi 0, %s19
    %s33 = sphi 0, %s35
    %s36 = sphi 0, %s33
    %s46 = sphi 0, %s36
  $region4: #{tpu_custom_call.1} parent=0 // loop_header_branch
    %15 = sbr.rel (%p13) target = $region8
  $region5: #{tpu_custom_call.1} parent=0 // loop_body
    %s17 = ssub.s32 %s12, 1
    %s22 = sadd.s32 1, %s19
    %p23 = scmp.ge.s32.totalorder %s22, 2
    %s24 = scalar_select %p23, 0, %s22
    %s25 = sadd.s32 1, %s18
    %s26 = scalar_select %p23, %s25, %s18
    %p27 = scmp.ge.s32.totalorder %s26, 2
    %s28 = scalar_select %p27, 0, %s26
    %s29 = ssub.s32 %s18, %s28
    %s30 = ssub.s32 %s19, %s24
    %s31 = sor.u32 %s29, %s30
    %p32 = scmp.eq.s32.totalorder %s31, 0
    %s34 = sadd.s32 %s33, 1
    %s35 = scalar_select %p32, %s33, %s34
    %p37 = pneg %p32
    %p38 = scmp.eq.s32.totalorder %s12, 3
    %p39 = por %p37, %p38
    %p40 = scmp.ne.s32.totalorder %s33, %s36
    %p41 = scmp.eq.s32.totalorder %s12, 0
    %p42 = por %p40, %p41
    %p43 = scmp.ne.s32.totalorder %s33, %s36
    %p44 = scmp.eq.s32.totalorder %s17, 3
    %p45 = por %p43, %p44
    %p47 = scmp.ne.s32.totalorder %s36, %s46
    %p48 = scmp.eq.s32.totalorder %s17, 0
    %p49 = por %p47, %p48
    %p50 = scmp.lt.s32.totalorder %s12, 4
    // Predicated region
    $region9: #{tpu_custom_call.1} parent=5 // pred_check
      %p51 = pneg %p50
    $region10: #{tpu_custom_call.1} parent=5 // pred_check_branch
      %53 = sbr.rel (%p51) target = $region12
    $region11: #{tpu_custom_call.1} parent=5 // pred_region
      %p54 = pneg %p42
      %p55 = pneg %p39
      %p56 = scmp.lt.s32.totalorder %s18, 1
      %s57 = scalar_select %p56, %s18, 1
      %p58 = scmp.lt.s32.totalorder %s19, 1
      %s59 = scalar_select %p58, %s19, 1
      %s60 = smul.addr %s57, 2
      %s61 = sadd.s32 %s59, %s60
      %s62 = smul.addr %s61, 8
      %s63 = scalar_lea.vmem %s2, %s62
      %p64 = scmp.lt.s32.totalorder %s18, 1
      %s65 = scalar_select %p64, %s18, 1
      %p66 = scmp.lt.s32.totalorder %s19, 1
      %s67 = scalar_select %p66, %s19, 1
      %s68 = smul.addr %s65, 2
      %s69 = sadd.s32 %s67, %s68
      %s70 = smul.addr %s69, 8
      %s71 = scalar_lea.vmem %s2, %s70
      %s72 = smul.u32 %s18, 16
      %s73 = smul.u32 %s19, 8
      %s74 = sadd.s32 %s72, %s73
      %s75 = sld [smem:[#allocation4 + %s74]]
      %s76 = sadd.s32 %s75, %s72
      %s77 = smul.addr %s76, 16
      %s78 = scalar_lea.hbm %s1, %s77
      // Predicated region
      $region13: #{tpu_custom_call.1} parent=11 // pred_check
        _
      $region14: #{tpu_custom_call.1} parent=11 // pred_check_branch
        %80 = sbr.rel target = $region16
      $region15: #{tpu_custom_call.1} parent=11 // pred_region
        %81 = sst [smem:[#allocation7]] [#allocation6]
        %82 = sst [smem:[#allocation8]] [#allocation5]
      $region16: #{tpu_custom_call.1} parent=11 // pred_fallthru
        _
      %84 = shalt.err (0)
      %s86 = sshll.u32 %s71, 4
      %s87 = int_to_ptr.vmem [resolvable:$true] %s86
      %89 = dma.hbm_to_vmem [thread:$0]  %s78, 16, %s87, [#allocation2]
      %s90 = sadd.s32 %s74, 1
      %s91 = sld [smem:[#allocation4 + %s90]]
      %s92 = sadd.s32 %s91, %s72
      %s93 = smul.addr %s92, 16
      %s94 = scalar_lea.hbm %s1, %s93
      %s95 = scalar_lea.vmem %s71, 1
      %s96 = scalar_lea.sflag [#allocation2], 1
      // Predicated region
      $region17: #{tpu_custom_call.1} parent=11 // pred_check
        _
      $region18: #{tpu_custom_call.1} parent=11 // pred_check_branch
        %98 = sbr.rel target = $region20
      $region19: #{tpu_custom_call.1} parent=11 // pred_region
        %99 = sst [smem:[#allocation7]] [#allocation10]
        %100 = sst [smem:[#allocation8]] [#allocation9]
      $region20: #{tpu_custom_call.1} parent=11 // pred_fallthru
        _
      %102 = shalt.err (0)
      %s104 = sshll.u32 %s95, 4
      %s105 = int_to_ptr.vmem [resolvable:$true] %s104
      %107 = dma.hbm_to_vmem [thread:$0]  %s94, 16, %s105, %s96
      %s108 = sadd.s32 %s74, 2
      %s109 = sld [smem:[#allocation4 + %s108]]
      %s110 = sadd.s32 %s109, %s72
      %s111 = smul.addr %s110, 16
      %s112 = scalar_lea.hbm %s1, %s111
      %s113 = scalar_lea.vmem %s71, 2
      %s114 = scalar_lea.sflag [#allocation2], 2
      // Predicated region
      $region21: #{tpu_custom_call.1} parent=11 // pred_check
        _
      $region22: #{tpu_custom_call.1} parent=11 // pred_check_branch
        %116 = sbr.rel target = $region24
      $region23: #{tpu_custom_call.1} parent=11 // pred_region
        %117 = sst [smem:[#allocation7]] [#allocation12]
        %118 = sst [smem:[#allocation8]] [#allocation11]
      $region24: #{tpu_custom_call.1} parent=11 // pred_fallthru
        _
      %120 = shalt.err (0)
      %s122 = sshll.u32 %s113, 4
      %s123 = int_to_ptr.vmem [resolvable:$true] %s122
      %125 = dma.hbm_to_vmem [thread:$0]  %s112, 16, %s123, %s114
      %s126 = sadd.s32 %s74, 3
      %s127 = sld [smem:[#allocation4 + %s126]]
      %s128 = sadd.s32 %s127, %s72
      %s129 = smul.addr %s128, 16
      %s130 = scalar_lea.hbm %s1, %s129
      %s131 = scalar_lea.vmem %s71, 3
      %s132 = scalar_lea.sflag [#allocation2], 3
      // Predicated region
      $region25: #{tpu_custom_call.1} parent=11 // pred_check
        _
      $region26: #{tpu_custom_call.1} parent=11 // pred_check_branch
        %134 = sbr.rel target = $region28
      $region27: #{tpu_custom_call.1} parent=11 // pred_region
        %135 = sst [smem:[#allocation7]] [#allocation14]
        %136 = sst [smem:[#allocation8]] [#allocation13]
      $region28: #{tpu_custom_call.1} parent=11 // pred_fallthru
        _
      %138 = shalt.err (0)
      %s140 = sshll.u32 %s131, 4
      %s141 = int_to_ptr.vmem [resolvable:$true] %s140
      %143 = dma.hbm_to_vmem [thread:$0]  %s130, 16, %s141, %s132
      %s144 = sadd.s32 %s74, 4
      %s145 = sld [smem:[#allocation4 + %s144]]
      %s146 = sadd.s32 %s145, %s72
      %s147 = smul.addr %s146, 16
      %s148 = scalar_lea.hbm %s1, %s147
      %s149 = scalar_lea.vmem %s71, 4
      %s150 = scalar_lea.sflag [#allocation2], 4
      // Predicated region
      $region29: #{tpu_custom_call.1} parent=11 // pred_check
        _
      $region30: #{tpu_custom_call.1} parent=11 // pred_check_branch
        %152 = sbr.rel target = $region32
      $region31: #{tpu_custom_call.1} parent=11 // pred_region
        %153 = sst [smem:[#allocation7]] [#allocation16]
        %154 = sst [smem:[#allocation8]] [#allocation15]
      $region32: #{tpu_custom_call.1} parent=11 // pred_fallthru
        _
      %156 = shalt.err (0)
      %s158 = sshll.u32 %s149, 4
      %s159 = int_to_ptr.vmem [resolvable:$true] %s158
      %161 = dma.hbm_to_vmem [thread:$0]  %s148, 16, %s159, %s150
      %s162 = sadd.s32 %s74, 5
      %s163 = sld [smem:[#allocation4 + %s162]]
      %s164 = sadd.s32 %s163, %s72
      %s165 = smul.addr %s164, 16
      %s166 = scalar_lea.hbm %s1, %s165
      %s167 = scalar_lea.vmem %s71, 5
      %s168 = scalar_lea.sflag [#allocation2], 5
      // Predicated region
      $region33: #{tpu_custom_call.1} parent=11 // pred_check
        _
      $region34: #{tpu_custom_call.1} parent=11 // pred_check_branch
        %170 = sbr.rel target = $region36
      $region35: #{tpu_custom_call.1} parent=11 // pred_region
        %171 = sst [smem:[#allocation7]] [#allocation18]
        %172 = sst [smem:[#allocation8]] [#allocation17]
      $region36: #{tpu_custom_call.1} parent=11 // pred_fallthru
        _
      %174 = shalt.err (0)
      %s176 = sshll.u32 %s167, 4
      %s177 = int_to_ptr.vmem [resolvable:$true] %s176
      %179 = dma.hbm_to_vmem [thread:$0]  %s166, 16, %s177, %s168
      %s180 = sadd.s32 %s74, 6
      %s181 = sld [smem:[#allocation4 + %s180]]
      %s182 = sadd.s32 %s181, %s72
      %s183 = smul.addr %s182, 16
      %s184 = scalar_lea.hbm %s1, %s183
      %s185 = scalar_lea.vmem %s71, 6
      %s186 = scalar_lea.sflag [#allocation2], 6
      // Predicated region
      $region37: #{tpu_custom_call.1} parent=11 // pred_check
        _
      $region38: #{tpu_custom_call.1} parent=11 // pred_check_branch
        %188 = sbr.rel target = $region40
      $region39: #{tpu_custom_call.1} parent=11 // pred_region
        %189 = sst [smem:[#allocation7]] [#allocation20]
        %190 = sst [smem:[#allocation8]] [#allocation19]
      $region40: #{tpu_custom_call.1} parent=11 // pred_fallthru
        _
      %192 = shalt.err (0)
      %s194 = sshll.u32 %s185, 4
      %s195 = int_to_ptr.vmem [resolvable:$true] %s194
      %197 = dma.hbm_to_vmem [thread:$0]  %s184, 16, %s195, %s186
      %s198 = sadd.s32 %s74, 7
      %s199 = sld [smem:[#allocation4 + %s198]]
      %s200 = sadd.s32 %s199, %s72
      %s201 = smul.addr %s200, 16
      %s202 = scalar_lea.hbm %s1, %s201
      %s203 = scalar_lea.vmem %s71, 7
      %s204 = scalar_lea.sflag [#allocation2], 7
      // Predicated region
      $region41: #{tpu_custom_call.1} parent=11 // pred_check
        _
      $region42: #{tpu_custom_call.1} parent=11 // pred_check_branch
        %206 = sbr.rel target = $region44
      $region43: #{tpu_custom_call.1} parent=11 // pred_region
        %207 = sst [smem:[#allocation7]] [#allocation22]
        %208 = sst [smem:[#allocation8]] [#allocation21]
      $region44: #{tpu_custom_call.1} parent=11 // pred_fallthru
        _
      %210 = shalt.err (0)
      %s212 = sshll.u32 %s203, 4
      %s213 = int_to_ptr.vmem [resolvable:$true] %s212
      %215 = dma.hbm_to_vmem [thread:$0]  %s202, 16, %s213, %s204
      %s216 = smul.u32 1, 1
      %s217 = sshll.u32 %s216, 4
      %218 = dma.done [#allocation2], %s217
      %s219 = sshll.u32 %s216, 4
      %220 = dma.done %s96, %s219
      %s221 = sshll.u32 %s216, 4
      %222 = dma.done %s114, %s221
      %s223 = sshll.u32 %s216, 4
      %224 = dma.done %s132, %s223
      %s225 = sshll.u32 %s216, 4
      %226 = dma.done %s150, %s225
      %s227 = sshll.u32 %s216, 4
      %228 = dma.done %s168, %s227
      %s229 = sshll.u32 %s216, 4
      %230 = dma.done %s186, %s229
      %s231 = sshll.u32 %s216, 4
      %232 = dma.done %s204, %s231
      %p233 = scmp.lt.s32.totalorder %s18, 1
      %s234 = scalar_select %p233, %s18, 1
      %p235 = scmp.lt.s32.totalorder %s19, 1
      %s236 = scalar_select %p235, %s19, 1
      %s237 = smul.addr %s234, 2
      %s238 = sadd.s32 %s236, %s237
      %s239 = smul.addr %s238, 8
      %s240 = scalar_lea.vmem %s2, %s239
      // Predicated region
      $region45: #{tpu_custom_call.1} parent=11 // pred_check
        %p241 = pneg %p39
      $region46: #{tpu_custom_call.1} parent=11 // pred_check_branch
        %243 = sbr.rel (%p241) target = $region48
      $region47: #{tpu_custom_call.1} parent=11 // pred_region
        _
      $region48: #{tpu_custom_call.1} parent=11 // pred_fallthru
        _
    $region12: #{tpu_custom_call.1} parent=5 // pred_fallthru
      _
    %p244 = scmp.le.s32.totalorder 1, %s12
    // Predicated region
    $region49: #{tpu_custom_call.1} parent=5 // pred_check
      %p245 = pneg %p244
    $region50: #{tpu_custom_call.1} parent=5 // pred_check_branch
      %247 = sbr.rel (%p245) target = $region52
    $region51: #{tpu_custom_call.1} parent=5 // pred_region
      %s248 = ssub.s32 %s12, 1
      // Predicated region
      $region53: #{tpu_custom_call.1} parent=51 // pred_check
        %p249 = pneg %p45
      $region54: #{tpu_custom_call.1} parent=51 // pred_check_branch
        %251 = sbr.rel (%p249) target = $region56
      $region55: #{tpu_custom_call.1} parent=51 // pred_region
        %p252 = scmp.lt.s32.totalorder %s20, 1
        %s253 = scalar_select %p252, %s20, 1
        %p254 = scmp.lt.s32.totalorder %s21, 1
        %s255 = scalar_select %p254, %s21, 1
        %s256 = smul.addr %s253, 2
        %s257 = sadd.s32 %s255, %s256
        %s258 = smul.addr %s257, 8
        %s259 = scalar_lea.vmem %s2, %s258
      $region56: #{tpu_custom_call.1} parent=51 // pred_fallthru
        _
    $region52: #{tpu_custom_call.1} parent=5 // pred_fallthru
      _
  $region6: #{tpu_custom_call.1} parent=0 // loop_footer
    %s16 = sadd.s32 1, %s12
  $region7: #{tpu_custom_call.1} parent=0 // loop_footer_branch
    %11 = sbr.rel target = $region3
  $region8: #{tpu_custom_call.1} parent=0 // loop_exit
    _
  %260 = vsyncmov [#allocation2]
  %s261 = vpop.sfrf %260
  %p262 = scmp.eq.s32.totalorder %s261, 0
  %p263 = pneg %p262
  %265 = shalt.err (%p263)
  %s266 = scalar_lea.sflag [#allocation2], 1
  %267 = vsyncmov %s266
  %s268 = vpop.sfrf %267
  %p269 = scmp.eq.s32.totalorder %s268, 0
  %p270 = pneg %p269
  %272 = shalt.err (%p270)
  %s273 = scalar_lea.sflag [#allocation2], 2
  %274 = vsyncmov %s273
  %s275 = vpop.sfrf %274
  %p276 = scmp.eq.s32.totalorder %s275, 0
  %p277 = pneg %p276
  %279 = shalt.err (%p277)
  %s280 = scalar_lea.sflag [#allocation2], 3
  %281 = vsyncmov %s280
  %s282 = vpop.sfrf %281
  %p283 = scmp.eq.s32.totalorder %s282, 0
  %p284 = pneg %p283
  %286 = shalt.err (%p284)
  %s287 = scalar_lea.sflag [#allocation2], 4
  %288 = vsyncmov %s287
  %s289 = vpop.sfrf %288
  %p290 = scmp.eq.s32.totalorder %s289, 0
  %p291 = pneg %p290
  %293 = shalt.err (%p291)
  %s294 = scalar_lea.sflag [#allocation2], 5
  %295 = vsyncmov %s294
  %s296 = vpop.sfrf %295
  %p297 = scmp.eq.s32.totalorder %s296, 0
  %p298 = pneg %p297
  %300 = shalt.err (%p298)
  %s301 = scalar_lea.sflag [#allocation2], 6
  %302 = vsyncmov %s301
  %s303 = vpop.sfrf %302
  %p304 = scmp.eq.s32.totalorder %s303, 0
  %p305 = pneg %p304
  %307 = shalt.err (%p305)
  %s308 = scalar_lea.sflag [#allocation2], 7
  %309 = vsyncmov %s308
  %s310 = vpop.sfrf %309
  %p311 = scmp.eq.s32.totalorder %s310, 0
  %p312 = pneg %p311
  %314 = shalt.err (%p312)

</llo_original>
